<compile_context>
chip_gen: v7x
topology: tpu7x:2x2x1
jax: 0.10.0
libtpu: 0.0.40
codegen_flags: <defaults>
</compile_context>

<pallas_src>
import math

import jax
import jax.numpy as jnp
from jax.experimental import pallas as pl
from jax.experimental.pallas import tpu as pltpu


def _build_pe(max_len: int, d_model: int) -> jnp.ndarray:
    """Replicates the PyTorch sinusoidal positional-encoding buffer (max_len, d_model)."""
    position = jnp.arange(0, max_len, dtype=jnp.float32)[:, None]             # (L, 1)
    div_term = jnp.exp(
        jnp.arange(0, d_model, 2, dtype=jnp.float32) * (-math.log(10000.0) / d_model)
    )                                                                          # (D/2,)
    angles = position * div_term                                               # (L, D/2)
    pe = jnp.zeros((max_len, d_model), dtype=jnp.float32)
    pe = pe.at[:, 0::2].set(jnp.sin(angles))
    pe = pe.at[:, 1::2].set(jnp.cos(angles))
    return pe


def _round_up(n: int, m: int) -> int:
    return ((n + m - 1) // m) * m


def _choose_s_tile(S: int, B: int, D: int, itemsize: int = 4) -> int:
    """Pick an S-tile: multiple of 8, capped at 512 rows, and sized so the
    double-buffered working set (x + out + pe, 2 buffers each) stays well under
    the scoped VMEM limit on every generation (incl. v7x's smaller VMEM)."""
    budget_bytes = 12 << 20                       # conservative across v5e/v6e/v7x
    per_row = (4 * B * D + 2 * D) * itemsize      # 2×x + 2×out + 2×pe per S-row
    ts = budget_bytes // max(per_row, 1)
    ts = max(8, min(512, (ts // 8) * 8))          # multiple of 8 for pe's sublane tiling
    ts = min(ts, _round_up(S, 8))                 # don't exceed (rounded) sequence length
    return ts


def _pos_enc_kernel(scale_ref, x_ref, pe_ref, out_ref):
    # scale_ref: SMEM (1,) scalar; x_ref/out_ref: (TS, B, D) VMEM; pe_ref: (TS, D) VMEM.
    pe_scaled = scale_ref[0] * pe_ref[...]              # (TS, D): mul hoisted off the B axis
    out_ref[...] = x_ref[...] + pe_scaled[:, None, :]   # broadcast add over batch
    # TODO(synk): dropout is identity in eval mode; training-mode dropout
    # (pltpu.prng_seed + stateful_bernoulli) not implemented here.


def positional_encoding(x: jnp.ndarray, scale: jnp.ndarray, pe_full: jnp.ndarray) -> jnp.ndarray:
    """x: (S, B, D) float32; scale: (1,) float32; pe_full: (max_len, D) float32."""
    S, B, D = x.shape
    assert pe_full.shape[0] >= S and pe_full.shape[1] == D

    ts = _choose_s_tile(S, B, D, x.dtype.itemsize)
    grid = (pl.cdiv(S, ts),)

    return pl.pallas_call(
        _pos_enc_kernel,
        out_shape=jax.ShapeDtypeStruct((S, B, D), x.dtype),
        grid_spec=pltpu.PrefetchScalarGridSpec(
            num_scalar_prefetch=0,
            grid=grid,
            in_specs=[
                pl.BlockSpec(memory_space=pltpu.SMEM),            # scale (scalar, untiled)
                pl.BlockSpec((ts, B, D), lambda i: (i, 0, 0)),    # x: S-tiled
                pl.BlockSpec((ts, D), lambda i: (i, 0)),          # pe_full: rows read in place
            ],
            out_specs=pl.BlockSpec((ts, B, D), lambda i: (i, 0, 0)),
        ),
        compiler_params=pltpu.CompilerParams(
            dimension_semantics=("parallel",),                    # elementwise: shard over TCs
        ),
    )(scale, x, pe_full)


if __name__ == "__main__":
    d_model = 32
    max_len = 5000
    seq_len = 8
    batch = 2

    key = jax.random.PRNGKey(0)
    x = jax.random.normal(key, (seq_len, batch, d_model), dtype=jnp.float32)

    # Deterministic parameter init, matching nn.Parameter(torch.ones(1)).
    scale = jnp.ones((1,), dtype=jnp.float32)
    pe_full = _build_pe(max_len, d_model)

    out = positional_encoding(x, scale, pe_full)
    out = jax.block_until_ready(out)

    # Reference check in plain JAX (dropout = identity in eval mode).
    ref = x + scale[0] * pe_full[:seq_len][:, None, :]
    assert out.shape == (seq_len, batch, d_model)
    assert jnp.allclose(out, ref, atol=1e-6), "mismatch vs reference"

    print("KERNEL_OK")
</pallas_src>

<mosaic_0001>
module attributes {stable_mosaic.version = 11 : i64} {
  func.func @_pos_enc_kernel(%arg0: i32, %arg1: memref<1xf32, #tpu.memory_space<smem>>, %arg2: memref<8x2x32xf32, #tpu.memory_space<vmem>>, %arg3: memref<8x32xf32, #tpu.memory_space<vmem>>, %arg4: memref<8x2x32xf32, #tpu.memory_space<vmem>>) attributes {dimension_semantics = [#tpu.dimension_semantics<parallel>], iteration_bounds = array<i64: 1>, scalar_prefetch = 0 : i64, scratch_operands = 0 : i64, tpu.core_type = #tpu.core_type<tc>, window_params = [{transform_indices = @transform_0, window_bounds = array<i64: 1>}, {transform_indices = @transform_1, window_bounds = array<i64: 8, 2, 32>}, {transform_indices = @transform_2, window_bounds = array<i64: 8, 32>}, {transform_indices = @transform_3, window_bounds = array<i64: 8, 2, 32>}]} {
    %c0 = arith.constant 0 : index
    %0 = memref.load %arg1[%c0] : memref<1xf32, #tpu.memory_space<smem>>
    %c0_0 = arith.constant 0 : index
    %c0_1 = arith.constant 0 : index
    %1 = vector.load %arg3[%c0_0, %c0_1] : memref<8x32xf32, #tpu.memory_space<vmem>>, vector<8x32xf32>
    %2 = vector.broadcast %0 : f32 to vector<8x32xf32>
    %3 = arith.mulf %2, %1 : vector<8x32xf32>
    %c0_2 = arith.constant 0 : index
    %c0_3 = arith.constant 0 : index
    %c0_4 = arith.constant 0 : index
    %4 = vector.load %arg2[%c0_2, %c0_3, %c0_4] : memref<8x2x32xf32, #tpu.memory_space<vmem>>, vector<8x2x32xf32>
    %5 = vector.shape_cast %3 : vector<8x32xf32> to vector<8x1x32xf32>
    %6 = vector.broadcast %5 : vector<8x1x32xf32> to vector<8x2x32xf32>
    %7 = arith.addf %4, %6 : vector<8x2x32xf32>
    %c0_5 = arith.constant 0 : index
    %c0_6 = arith.constant 0 : index
    %c0_7 = arith.constant 0 : index
    %8 = vector.load %arg4[%c0_5, %c0_6, %c0_7] : memref<8x2x32xf32, #tpu.memory_space<vmem>>, vector<8x2x32xf32>
    tpu.vector_store %arg4[%c0_5, %c0_6, %c0_7], %7 {strides = array<i32>} : memref<8x2x32xf32, #tpu.memory_space<vmem>>, vector<8x2x32xf32>,
    return
  }
  func.func @transform_0(%arg0: i32) -> i32 {
    %c0_i32 = arith.constant 0 : i32
    %c0_i32_0 = arith.constant 0 : i32
    return %c0_i32 : i32
  }
  func.func @transform_1(%arg0: i32) -> (i32, i32, i32) {
    %c0_i32 = arith.constant 0 : i32
    %c0_i32_0 = arith.constant 0 : i32
    %c0_i32_1 = arith.constant 0 : i32
    return %arg0, %c0_i32, %c0_i32_0 : i32, i32, i32
  }
  func.func @transform_2(%arg0: i32) -> (i32, i32) {
    %c0_i32 = arith.constant 0 : i32
    %c0_i32_0 = arith.constant 0 : i32
    return %arg0, %c0_i32 : i32, i32
  }
  func.func @transform_3(%arg0: i32) -> (i32, i32, i32) {
    %c0_i32 = arith.constant 0 : i32
    %c0_i32_0 = arith.constant 0 : i32
    %c0_i32_1 = arith.constant 0 : i32
    return %arg0, %c0_i32, %c0_i32_0 : i32, i32, i32
  }
}

</mosaic_0001>

<llo_original>
// kernel: tpu_custom_call.1
$region0: #{tpu_custom_call.1}
  #allocation0 [shape = 'u32[]', space=smem, size = 0x4, offset = 0x4, fixed_abs, tag = 'smem constant byte address 0x4 - core index']
  #allocation1 [shape = 'u32[144,128]{1,0:T(1,128)}', space=vmem, size = 0x12000, scoped, tag = 'internal scratch']
  #allocation2 [shape = 'f32[1]{0:T(128)S(6)}', space=smem, size = 0x200, scoped, tag = 'scoped memory for tpu_custom_call.1']
  %s0 = inlined_call_operand.<no memory space> [shape: f32[1], index: 0, kind: input, shape index: {}]
  %s1 = inlined_call_operand.vmem [shape: f32[8,2,32], index: 1, kind: input, shape index: {}]
  %s2 = inlined_call_operand.vmem [shape: f32[5000,32], index: 2, kind: input, shape index: {}]
  %s3 = inlined_call_operand.hbm [shape: f32[8,2,32], index: 3, kind: output, shape index: {}]
  %s4 = sld [smem:[#allocation0]]
  $region22: #{tpu_custom_call.1} parent=0
    _
  %s6 = ssub.s32 1, %s4
  %s7 = scalar_select 0, %s6, %s4
  %8 = sst [smem:[#allocation2]] %s0
  $region1: #{tpu_custom_call.1} parent=0
    #allocation3 [shape = 'u8[8192]{0}', space=vmem, size = 0x2000, scoped, tag = 'output window, operand 0, single buffered']
    #allocation4 [shape = 's32[1]{0}', space=sflag, size = 0x4, scoped, tag = 'scoped memory for tpu_custom_call.1']
    %9 = vsyncpa [#allocation4], 0
    // Predicated region
    $region2: #{tpu_custom_call.1} parent=1 // pred_check
      _
    $region3: #{tpu_custom_call.1} parent=1 // pred_check_branch
      %11 = sbr.rel (0) target = $region5
    $region4: #{tpu_custom_call.1} parent=1 // pred_region
      _
    $region5: #{tpu_custom_call.1} parent=1 // pred_fallthru
      _
    // Predicated region
    $region6: #{tpu_custom_call.1} parent=1 // pred_check
      _
    $region7: #{tpu_custom_call.1} parent=1 // pred_check_branch
      %13 = sbr.rel (0) target = $region9
    $region8: #{tpu_custom_call.1} parent=1 // pred_region
      _
    $region9: #{tpu_custom_call.1} parent=1 // pred_fallthru
      _
    // Predicated region
    $region10: #{tpu_custom_call.1} parent=1 // pred_check
      _
    $region11: #{tpu_custom_call.1} parent=1 // pred_check_branch
      %15 = sbr.rel (0) target = $region13
    $region12: #{tpu_custom_call.1} parent=1 // pred_region
      _
    $region13: #{tpu_custom_call.1} parent=1 // pred_fallthru
      _
    %s16 = sld [smem:[#allocation2]]
    %v17 = vld [vmem:[%s2] sm:$0xff]
    %v18 = vstv %s16
    %v19 = vmul.f32 %v18, %v17
    %v20 = vld [vmem:[%s1] sm:$0x3]
    %v21 = vld [vmem:[%s1 + $0x2] sm:$0x3]
    %v22 = vld [vmem:[%s1 + $0x4] sm:$0x3]
    %v23 = vld [vmem:[%s1 + $0x6] sm:$0x3]
    %v24 = vld [vmem:[%s1 + $0x8] sm:$0x3]
    %v25 = vld [vmem:[%s1 + $0xa] sm:$0x3]
    %v26 = vld [vmem:[%s1 + $0xc] sm:$0x3]
    %v27 = vld [vmem:[%s1 + $0xe] sm:$0x3]
    %v29 = vcombine.high %v19, %v19
    %v31 = vunpack.c.l.s4 1966171168
    %v32 = vunpack.c.0.s8 %v31
    %v33 = vlaneseq
    %v34 = vshrl.u32 %v33, 7
    %v35 = vsub.s32 %v32, %v34
    %v36 = vrot.slane %v19, %v35
    %v38 = vunpack.c.l.s4 1966171168
    %v39 = vunpack.c.0.s8 %v38
    %v40 = vlaneseq
    %v41 = vshrl.u32 %v40, 7
    %v42 = vsub.s32 %v39, %v41
    %v43 = vrot.slane %v29, %v42
    %v44 = vcombine.high %v36, %v36
    %v45 = vcombine.high %v43, %v43
    %v47 = vunpack.c.l.s4 1966171168
    %v48 = vunpack.c.0.s8 %v47
    %v49 = vlaneseq
    %v50 = vshrl.u32 %v49, 7
    %v51 = vsub.s32 %v48, %v50
    %v52 = vrot.slane %v36, %v51
    %v54 = vunpack.c.l.s4 1966171168
    %v55 = vunpack.c.0.s8 %v54
    %v56 = vlaneseq
    %v57 = vshrl.u32 %v56, 7
    %v58 = vsub.s32 %v55, %v57
    %v59 = vrot.slane %v43, %v58
    %v61 = vunpack.c.l.s4 1966171168
    %v62 = vunpack.c.0.s8 %v61
    %v63 = vlaneseq
    %v64 = vshrl.u32 %v63, 7
    %v65 = vsub.s32 %v62, %v64
    %v66 = vrot.slane %v44, %v65
    %v68 = vunpack.c.l.s4 1966171168
    %v69 = vunpack.c.0.s8 %v68
    %v70 = vlaneseq
    %v71 = vshrl.u32 %v70, 7
    %v72 = vsub.s32 %v69, %v71
    %v73 = vrot.slane %v45, %v72
    %v74 = vcombine.high %v52, %v52
    %v75 = vcombine.high %v59, %v59
    %v76 = vcombine.high %v66, %v66
    %v77 = vcombine.high %v73, %v73
    %v78 = vlaneseq
    %v79 = vshrl.u32 %v78, 7
    %v80 = vsub.s32 0, %v79
    %v81 = vrot.slane %v52, %v80
    %v82 = vlaneseq
    %v83 = vshrl.u32 %v82, 7
    %v84 = vsub.s32 0, %v83
    %v85 = vrot.slane %v66, %v84
    %v86 = vlaneseq
    %v87 = vshrl.u32 %v86, 7
    %v88 = vsub.s32 0, %v87
    %v89 = vrot.slane %v74, %v88
    %v90 = vlaneseq
    %v91 = vshrl.u32 %v90, 7
    %v92 = vsub.s32 0, %v91
    %v93 = vrot.slane %v76, %v92
    %v94 = vlaneseq
    %v95 = vshrl.u32 %v94, 7
    %v96 = vsub.s32 0, %v95
    %v97 = vrot.slane %v59, %v96
    %v98 = vlaneseq
    %v99 = vshrl.u32 %v98, 7
    %v100 = vsub.s32 0, %v99
    %v101 = vrot.slane %v73, %v100
    %v102 = vlaneseq
    %v103 = vshrl.u32 %v102, 7
    %v104 = vsub.s32 0, %v103
    %v105 = vrot.slane %v75, %v104
    %v106 = vlaneseq
    %v107 = vshrl.u32 %v106, 7
    %v108 = vsub.s32 0, %v107
    %v109 = vrot.slane %v77, %v108
    %v118 = vadd.f32 %v20, %v81
    %v119 = vadd.f32 %v21, %v85
    %v120 = vadd.f32 %v22, %v89
    %v121 = vadd.f32 %v23, %v93
    %v122 = vadd.f32 %v24, %v97
    %v123 = vadd.f32 %v25, %v101
    %v124 = vadd.f32 %v26, %v105
    %v125 = vadd.f32 %v27, %v109
    %vm126 = vcmask 254976
    %127 = vst.msk [vmem:[#allocation3] sm:$0x3] %vm126, %v118
    %128 = vst.msk [vmem:[#allocation3 + $0x2] sm:$0x3] %vm126, %v119
    %129 = vst.msk [vmem:[#allocation3 + $0x4] sm:$0x3] %vm126, %v120
    %130 = vst.msk [vmem:[#allocation3 + $0x6] sm:$0x3] %vm126, %v121
    %131 = vst.msk [vmem:[#allocation3 + $0x8] sm:$0x3] %vm126, %v122
    %132 = vst.msk [vmem:[#allocation3 + $0xa] sm:$0x3] %vm126, %v123
    %133 = vst.msk [vmem:[#allocation3 + $0xc] sm:$0x3] %vm126, %v124
    %134 = vst.msk [vmem:[#allocation3 + $0xe] sm:$0x3] %vm126, %v125
    // Predicated region
    $region14: #{tpu_custom_call.1} parent=1 // pred_check
      _
    $region15: #{tpu_custom_call.1} parent=1 // pred_check_branch
      %136 = sbr.rel (0) target = $region17
    $region16: #{tpu_custom_call.1} parent=1 // pred_region
      %s138 = ssub.s32 256, 256
      %139 = vsyncadd [#allocation4], %s138
      %s140 = sshll.u32 [#allocation3], 4
      %s141 = int_to_ptr.vmem [resolvable:$true] %s140
      %146 = dma.vmem_to_hbm [thread:$0]  %s141, 256, %s3, [#allocation4], 32, 32, 2
    $region17: #{tpu_custom_call.1} parent=1 // pred_fallthru
      _
    // Predicated region
    $region18: #{tpu_custom_call.1} parent=1 // pred_check
      _
    $region19: #{tpu_custom_call.1} parent=1 // pred_check_branch
      %148 = sbr.rel (0) target = $region21
    $region20: #{tpu_custom_call.1} parent=1 // pred_region
      %149 = dma.done [#allocation4], 256
    $region21: #{tpu_custom_call.1} parent=1 // pred_fallthru
      _
    %150 = vsyncpa [#allocation4], 1

</llo_original>
